<compile_context>
chip_gen: v5e
topology: v5e:2x2
jax: 0.10.0
libtpu: 0.0.40
codegen_flags: <defaults>
</compile_context>

<pallas_src>
import functools

import jax
import jax.numpy as jnp
from jax.experimental import pallas as pl
from jax.experimental.pallas import tpu as pltpu

_BN_EPS = 1e-5
_LANE = 128


def _round_up(n, m):
    return ((n + m - 1) // m) * m


def _dnn_fused_kernel(x_ref, w_ref, g_ref, b_ref, o_ref, *, n_layers):
    """Entire DNN forward: L x (matmul + training-mode BN + optional tanh)."""
    x = x_ref[...]                                       # (B, Dpad) f32
    for l in range(n_layers):                            # static unroll (L small)
        w = w_ref[l]                                     # (Dpad, Dpad) == padded W_l.T
        y = jnp.dot(x, w, preferred_element_type=jnp.float32)   # (B, Dpad) on MXU

        # BatchNorm1d, training mode: per-feature mean / biased variance over batch.
        mean = jnp.mean(y, axis=0, keepdims=True)        # (1, Dpad)
        yc = y - mean
        var = jnp.mean(yc * yc, axis=0, keepdims=True)   # biased variance
        scale = g_ref[l] * jax.lax.rsqrt(var + _BN_EPS)  # fused gamma * inv_std (EUP)
        y = yc * scale + b_ref[l]                        # single scale+shift pass

        if l != n_layers - 1:
            y = jnp.tanh(y)
        x = y
    o_ref[...] = x.astype(o_ref.dtype)


def _fused_forward(x_pad, w_stack, g_stack, b_stack):
    B, D = x_pad.shape
    L = w_stack.shape[0]
    kernel = functools.partial(_dnn_fused_kernel, n_layers=L)
    return pl.pallas_call(
        kernel,
        out_shape=jax.ShapeDtypeStruct((B, D), jnp.float32),
        in_specs=[
            pl.BlockSpec((B, D), lambda: (0, 0),
                         memory_space=pltpu.MemorySpace.VMEM),
            pl.BlockSpec((L, D, D), lambda: (0, 0, 0),
                         memory_space=pltpu.MemorySpace.VMEM),
            pl.BlockSpec((L, 1, D), lambda: (0, 0, 0),
                         memory_space=pltpu.MemorySpace.VMEM),
            pl.BlockSpec((L, 1, D), lambda: (0, 0, 0),
                         memory_space=pltpu.MemorySpace.VMEM),
        ],
        out_specs=pl.BlockSpec((B, D), lambda: (0, 0),
                               memory_space=pltpu.MemorySpace.VMEM),
    )(x_pad, w_stack, g_stack, b_stack)


def init_params(key, layers_dims, init="gauss", width=0.01):
    """Deterministic synthetic parameters matching the torch __init__ shapes."""
    params = []
    n_layers = len(layers_dims) - 1
    keys = jax.random.split(key, n_layers)
    for l in range(n_layers):
        din, dout = layers_dims[l], layers_dims[l + 1]
        if init == "gauss":
            w = width * jax.random.normal(keys[l], (dout, din), dtype=jnp.float32)
        else:  # uniform
            w = jax.random.uniform(
                keys[l], (dout, din), dtype=jnp.float32,
                minval=-width / 2, maxval=width / 2)
        gamma = jnp.ones((1, dout), dtype=jnp.float32)   # BatchNorm1d default weight
        beta = jnp.zeros((1, dout), dtype=jnp.float32)   # BatchNorm1d default bias
        params.append((w, gamma, beta))
    return params


def prepare_params(params, layers_dims):
    """One-time pre-transpose + lane-dense zero-padding + stacking of all layers."""
    n_layers = len(params)
    d_pad = _round_up(max(layers_dims), _LANE)
    w_stack = jnp.zeros((n_layers, d_pad, d_pad), dtype=jnp.float32)
    g_stack = jnp.ones((n_layers, 1, d_pad), dtype=jnp.float32)
    b_stack = jnp.zeros((n_layers, 1, d_pad), dtype=jnp.float32)
    for l, (w, gamma, beta) in enumerate(params):
        dout, din = w.shape
        w_stack = w_stack.at[l, :din, :dout].set(jnp.transpose(w))  # (din, dout) block
        g_stack = g_stack.at[l, :, :dout].set(gamma)
        b_stack = b_stack.at[l, :, :dout].set(beta)
    return w_stack, g_stack, b_stack


@functools.partial(jax.jit, static_argnames=("layers_dims",))
def dnn_forward(x, w_stack, g_stack, b_stack, layers_dims):
    """Forward pass equivalent to DNN.forward (training-mode batch norm)."""
    size = layers_dims[0]
    x = jnp.reshape(x, (-1, size)).astype(jnp.float32)   # x.view(-1, size)
    B = x.shape[0]
    d_pad = w_stack.shape[-1]
    x_pad = jnp.zeros((B, d_pad), dtype=jnp.float32).at[:, :size].set(x)
    out_pad = _fused_forward(x_pad, w_stack, g_stack, b_stack)
    return out_pad[:, :layers_dims[-1]]


def _reference_forward(x, params, layers_dims):
    """Pure-JAX reference (mirrors the PyTorch module exactly)."""
    x = jnp.reshape(x, (-1, layers_dims[0])).astype(jnp.float32)
    n_layers = len(params)
    for l, (w, gamma, beta) in enumerate(params):
        y = x @ w.T
        mean = jnp.mean(y, axis=0, keepdims=True)
        var = jnp.mean((y - mean) ** 2, axis=0, keepdims=True)
        y = (y - mean) * jax.lax.rsqrt(var + _BN_EPS) * gamma + beta
        if l != n_layers - 1:
            y = jnp.tanh(y)
        x = y
    return x


if __name__ == "__main__":
    key = jax.random.PRNGKey(0)
    k_x, k_p = jax.random.split(key)

    # layers_dims = [input, hidden, output]
    layers_dims = (64, 32, 16)
    B = 8
    # Input shaped like an image batch; forward flattens it to (B, 64).
    x = jax.random.normal(k_x, (B, 1, 8, 8), dtype=jnp.float32)

    params = init_params(k_p, layers_dims, init="gauss", width=0.01)
    w_stack, g_stack, b_stack = prepare_params(params, layers_dims)

    out = dnn_forward(x, w_stack, g_stack, b_stack, layers_dims)
    jax.block_until_ready(out)

    assert out.shape == (B, layers_dims[-1])

    ref = _reference_forward(x, params, layers_dims)
    jax.block_until_ready(ref)
    assert jnp.allclose(out, ref, atol=1e-4, rtol=1e-4), "mismatch vs reference"

    print("KERNEL_OK")
</pallas_src>

<mosaic_0001>
module attributes {stable_mosaic.version = 11 : i64} {
  func.func @_dnn_fused_kernel(%arg0: memref<8x128xf32, #tpu.memory_space<vmem>>, %arg1: memref<2x128x128xf32, #tpu.memory_space<vmem>>, %arg2: memref<2x1x128xf32, #tpu.memory_space<vmem>>, %arg3: memref<2x1x128xf32, #tpu.memory_space<vmem>>, %arg4: memref<8x128xf32, #tpu.memory_space<vmem>>) attributes {dimension_semantics = [], scalar_prefetch = 0 : i64, scratch_operands = 0 : i64, tpu.core_type = #tpu.core_type<tc>} {
    %c0 = arith.constant 0 : index
    %c0_0 = arith.constant 0 : index
    %0 = vector.load %arg0[%c0, %c0_0] : memref<8x128xf32, #tpu.memory_space<vmem>>, vector<8x128xf32>
    %c0_1 = arith.constant 0 : index
    %c0_2 = arith.constant 0 : index
    %c0_3 = arith.constant 0 : index
    %1 = vector.load %arg1[%c0_1, %c0_2, %c0_3] : memref<2x128x128xf32, #tpu.memory_space<vmem>>, vector<1x128x128xf32>
    %2 = vector.shape_cast %1 : vector<1x128x128xf32> to vector<128x128xf32>
    %cst = arith.constant dense<0.000000e+00> : vector<8x128xf32>
    %3 = tpu.matmul %0, %2, %cst {dimension_numbers = #tpu.dot_dimension_numbers<[1], [0], [0], [1], [0, 0, 1, 1], [], []>} : vector<8x128xf32>, vector<128x128xf32>, vector<8x128xf32> -> vector<8x128xf32>
    %cst_4 = arith.constant dense<0.000000e+00> : vector<128xf32>
    %4 = vector.multi_reduction <add>, %3, %cst_4 [0] : vector<8x128xf32> to vector<128xf32>
    %5 = vector.shape_cast %4 : vector<128xf32> to vector<1x128xf32>
    %cst_5 = arith.constant 8.000000e+00 : f32
    %6 = vector.broadcast %cst_5 : f32 to vector<1x128xf32>
    %7 = arith.divf %5, %6 : vector<1x128xf32>
    %8 = vector.broadcast %7 : vector<1x128xf32> to vector<8x128xf32>
    %9 = arith.subf %3, %8 : vector<8x128xf32>
    %10 = arith.mulf %9, %9 : vector<8x128xf32>
    %cst_6 = arith.constant dense<0.000000e+00> : vector<128xf32>
    %11 = vector.multi_reduction <add>, %10, %cst_6 [0] : vector<8x128xf32> to vector<128xf32>
    %12 = vector.shape_cast %11 : vector<128xf32> to vector<1x128xf32>
    %cst_7 = arith.constant 8.000000e+00 : f32
    %13 = vector.broadcast %cst_7 : f32 to vector<1x128xf32>
    %14 = arith.divf %12, %13 : vector<1x128xf32>
    %c0_8 = arith.constant 0 : index
    %c0_9 = arith.constant 0 : index
    %c0_10 = arith.constant 0 : index
    %15 = vector.load %arg2[%c0_8, %c0_9, %c0_10] : memref<2x1x128xf32, #tpu.memory_space<vmem>>, vector<1x1x128xf32>
    %16 = vector.shape_cast %15 : vector<1x1x128xf32> to vector<1x128xf32>
    %cst_11 = arith.constant 9.99999974E-6 : f32
    %17 = vector.broadcast %cst_11 : f32 to vector<1x128xf32>
    %18 = arith.addf %14, %17 : vector<1x128xf32>
    %19 = math.rsqrt %18 : vector<1x128xf32>
    %20 = arith.mulf %16, %19 : vector<1x128xf32>
    %21 = vector.broadcast %20 : vector<1x128xf32> to vector<8x128xf32>
    %22 = arith.mulf %9, %21 : vector<8x128xf32>
    %c0_12 = arith.constant 0 : index
    %c0_13 = arith.constant 0 : index
    %c0_14 = arith.constant 0 : index
    %23 = vector.load %arg3[%c0_12, %c0_13, %c0_14] : memref<2x1x128xf32, #tpu.memory_space<vmem>>, vector<1x1x128xf32>
    %24 = vector.shape_cast %23 : vector<1x1x128xf32> to vector<1x128xf32>
    %25 = vector.broadcast %24 : vector<1x128xf32> to vector<8x128xf32>
    %26 = arith.addf %22, %25 : vector<8x128xf32>
    %27 = math.tanh %26 : vector<8x128xf32>
    %c1 = arith.constant 1 : index
    %c0_15 = arith.constant 0 : index
    %c0_16 = arith.constant 0 : index
    %28 = vector.load %arg1[%c1, %c0_15, %c0_16] : memref<2x128x128xf32, #tpu.memory_space<vmem>>, vector<1x128x128xf32>
    %29 = vector.shape_cast %28 : vector<1x128x128xf32> to vector<128x128xf32>
    %cst_17 = arith.constant dense<0.000000e+00> : vector<8x128xf32>
    %30 = tpu.matmul %27, %29, %cst_17 {dimension_numbers = #tpu.dot_dimension_numbers<[1], [0], [0], [1], [0, 0, 1, 1], [], []>} : vector<8x128xf32>, vector<128x128xf32>, vector<8x128xf32> -> vector<8x128xf32>
    %cst_18 = arith.constant dense<0.000000e+00> : vector<128xf32>
    %31 = vector.multi_reduction <add>, %30, %cst_18 [0] : vector<8x128xf32> to vector<128xf32>
    %32 = vector.shape_cast %31 : vector<128xf32> to vector<1x128xf32>
    %cst_19 = arith.constant 8.000000e+00 : f32
    %33 = vector.broadcast %cst_19 : f32 to vector<1x128xf32>
    %34 = arith.divf %32, %33 : vector<1x128xf32>
    %35 = vector.broadcast %34 : vector<1x128xf32> to vector<8x128xf32>
    %36 = arith.subf %30, %35 : vector<8x128xf32>
    %37 = arith.mulf %36, %36 : vector<8x128xf32>
    %cst_20 = arith.constant dense<0.000000e+00> : vector<128xf32>
    %38 = vector.multi_reduction <add>, %37, %cst_20 [0] : vector<8x128xf32> to vector<128xf32>
    %39 = vector.shape_cast %38 : vector<128xf32> to vector<1x128xf32>
    %cst_21 = arith.constant 8.000000e+00 : f32
    %40 = vector.broadcast %cst_21 : f32 to vector<1x128xf32>
    %41 = arith.divf %39, %40 : vector<1x128xf32>
    %c1_22 = arith.constant 1 : index
    %c0_23 = arith.constant 0 : index
    %c0_24 = arith.constant 0 : index
    %42 = vector.load %arg2[%c1_22, %c0_23, %c0_24] : memref<2x1x128xf32, #tpu.memory_space<vmem>>, vector<1x1x128xf32>
    %43 = vector.shape_cast %42 : vector<1x1x128xf32> to vector<1x128xf32>
    %cst_25 = arith.constant 9.99999974E-6 : f32
    %44 = vector.broadcast %cst_25 : f32 to vector<1x128xf32>
    %45 = arith.addf %41, %44 : vector<1x128xf32>
    %46 = math.rsqrt %45 : vector<1x128xf32>
    %47 = arith.mulf %43, %46 : vector<1x128xf32>
    %48 = vector.broadcast %47 : vector<1x128xf32> to vector<8x128xf32>
    %49 = arith.mulf %36, %48 : vector<8x128xf32>
    %c1_26 = arith.constant 1 : index
    %c0_27 = arith.constant 0 : index
    %c0_28 = arith.constant 0 : index
    %50 = vector.load %arg3[%c1_26, %c0_27, %c0_28] : memref<2x1x128xf32, #tpu.memory_space<vmem>>, vector<1x1x128xf32>
    %51 = vector.shape_cast %50 : vector<1x1x128xf32> to vector<1x128xf32>
    %52 = vector.broadcast %51 : vector<1x128xf32> to vector<8x128xf32>
    %53 = arith.addf %49, %52 : vector<8x128xf32>
    %c0_29 = arith.constant 0 : index
    %c0_30 = arith.constant 0 : index
    %54 = vector.load %arg4[%c0_29, %c0_30] : memref<8x128xf32, #tpu.memory_space<vmem>>, vector<8x128xf32>
    tpu.vector_store %arg4[%c0_29, %c0_30], %53 {strides = array<i32>} : memref<8x128xf32, #tpu.memory_space<vmem>>, vector<8x128xf32>,
    return
  }
}

</mosaic_0001>

<llo_original>
// kernel: dnn_forward.1
$region0: #{dnn_forward.1}
  #allocation0 [shape = 'u32[]', space=smem, size = 0x4, offset = 0x4, fixed_abs, tag = 'smem constant byte address 0x4 - core index']
  #allocation1 [shape = 'u32[72,128]{1,0:T(1,128)}', space=vmem, size = 0x9000, scoped, tag = 'internal scratch']
  %s0 = inlined_call_operand.vmem [shape: f32[8,128], index: 0, kind: input, shape index: {}]
  %s1 = inlined_call_operand.hbm [shape: f32[2,128,128], index: 1, kind: input, shape index: {}]
  %s2 = inlined_call_operand.vmem [shape: f32[2,1,128], index: 2, kind: input, shape index: {}]
  %s3 = inlined_call_operand.vmem [shape: f32[2,1,128], index: 3, kind: input, shape index: {}]
  %s4 = inlined_call_operand.hbm [shape: f32[8,128], index: 4, kind: output, shape index: {}]
  %s5 = sld [smem:[#allocation0]]
  $region30: #{dnn_forward.1} parent=0
    _
  %s7 = ssub.s32 1, %s5
  %s8 = scalar_select 0, %s7, %s5
  $region1: #{dnn_forward.1} parent=0
    #allocation2 [shape = 'u8[131072]{0}', space=vmem, size = 0x20000, scoped, tag = 'input window, operand 1, single buffered']
    #allocation3 [shape = 's32[1]{0}', space=sflag, size = 0x4, scoped, tag = 'scoped memory for dnn_forward.1']
    #allocation4 [shape = 's32[1]{0}', space=sflag, size = 0x4, scoped, tag = 'scoped memory for dnn_forward.1']
    #allocation5 [shape = 'u8[4096]{0}', space=vmem, size = 0x1000, scoped, tag = 'output window, operand 0, single buffered']
    %9 = vsyncpa [#allocation3], 0
    %10 = vsyncpa [#allocation4], 0
    // Predicated region
    $region2: #{dnn_forward.1} parent=1 // pred_check
      _
    $region3: #{dnn_forward.1} parent=1 // pred_check_branch
      %12 = sbr.rel (0) target = $region5
    $region4: #{dnn_forward.1} parent=1 // pred_region
      _
    $region5: #{dnn_forward.1} parent=1 // pred_fallthru
      _
    // Predicated region
    $region6: #{dnn_forward.1} parent=1 // pred_check
      _
    $region7: #{dnn_forward.1} parent=1 // pred_check_branch
      %14 = sbr.rel (0) target = $region9
    $region8: #{dnn_forward.1} parent=1 // pred_region
      %16 = vsyncadd [#allocation3], 0
      %s17 = sshll.u32 %s1, 4
      %s18 = int_to_ptr.hbm [resolvable:$true] %s17
      %s19 = sshll.u32 [#allocation2], 4
      %s20 = int_to_ptr.vmem [resolvable:$true] %s19
      %25 = dma.hbm_to_vmem [thread:$0]  %s18, 4096, %s20, [#allocation3], 128, 128, 8
    $region9: #{dnn_forward.1} parent=1 // pred_fallthru
      _
    // Predicated region
    $region10: #{dnn_forward.1} parent=1 // pred_check
      _
    $region11: #{dnn_forward.1} parent=1 // pred_check_branch
      %27 = sbr.rel (0) target = $region13
    $region12: #{dnn_forward.1} parent=1 // pred_region
      _
    $region13: #{dnn_forward.1} parent=1 // pred_fallthru
      _
    // Predicated region
    $region14: #{dnn_forward.1} parent=1 // pred_check
      _
    $region15: #{dnn_forward.1} parent=1 // pred_check_branch
      %29 = sbr.rel (0) target = $region17
    $region16: #{dnn_forward.1} parent=1 // pred_region
      _
    $region17: #{dnn_forward.1} parent=1 // pred_fallthru
      _
    // Predicated region
    $region18: #{dnn_forward.1} parent=1 // pred_check
      _
    $region19: #{dnn_forward.1} parent=1 // pred_check_branch
      %31 = sbr.rel (0) target = $region21
    $region20: #{dnn_forward.1} parent=1 // pred_region
      %33 = dma.done [#allocation3], 4096
    $region21: #{dnn_forward.1} parent=1 // pred_fallthru
      _
    %v34 = vld [vmem:[%s0] sm:$0xff]
    %v35 = vld [vmem:[#allocation2] sm:$0xff]
    %v36 = vld [vmem:[#allocation2 + $0x8] sm:$0xff]
    %v37 = vld [vmem:[#allocation2 + $0x10] sm:$0xff]
    %v38 = vld [vmem:[#allocation2 + $0x18] sm:$0xff]
    %v39 = vld [vmem:[#allocation2 + $0x20] sm:$0xff]
    %v40 = vld [vmem:[#allocation2 + $0x28] sm:$0xff]
    %v41 = vld [vmem:[#allocation2 + $0x30] sm:$0xff]
    %v42 = vld [vmem:[#allocation2 + $0x38] sm:$0xff]
    %v43 = vld [vmem:[#allocation2 + $0x40] sm:$0xff]
    %v44 = vld [vmem:[#allocation2 + $0x48] sm:$0xff]
    %v45 = vld [vmem:[#allocation2 + $0x50] sm:$0xff]
    %v46 = vld [vmem:[#allocation2 + $0x58] sm:$0xff]
    %v47 = vld [vmem:[#allocation2 + $0x60] sm:$0xff]
    %v48 = vld [vmem:[#allocation2 + $0x68] sm:$0xff]
    %v49 = vld [vmem:[#allocation2 + $0x70] sm:$0xff]
    %v50 = vld [vmem:[#allocation2 + $0x78] sm:$0xff]
    %51 = vmatpush.msra.mxu0 %v50
    %52 = vmatpush.msra.mxu0 %v49
    %53 = vmatpush.msra.mxu0 %v48
    %54 = vmatpush.msra.mxu0 %v47
    %55 = vmatpush.msra.mxu0 %v46
    %56 = vmatpush.msra.mxu0 %v45
    %57 = vmatpush.msra.mxu0 %v44
    %58 = vmatpush.msra.mxu0 %v43
    %59 = vmatpush.msra.mxu0 %v42
    %60 = vmatpush.msra.mxu0 %v41
    %61 = vmatpush.msra.mxu0 %v40
    %62 = vmatpush.msra.mxu0 %v39
    %63 = vmatpush.msra.mxu0 %v38
    %64 = vmatpush.msra.mxu0 %v37
    %65 = vmatpush.msra.mxu0 %v36
    %66 = vmatpush.msra.mxu0 %v35
    %67 = vmatmul.f32.gmra.mxu0 %v34
    %v68 = vpop.f32.mrf.mxu0
    %v69 = vadd.f32 0.0, %v68
    %70 = vdwg.mxu0
    %v71 = vrot.slane %v69, 4
    %v72 = vadd.f32 %v69, %v71
    %v73 = vrot.slane %v72, 2
    %v74 = vadd.f32 %v72, %v73
    %v75 = vrot.slane %v74, 1
    %v76 = vadd.f32 %v74, %v75
    %v77 = vrcp.pop 8.0
    %v78 = vmul.f32 8.0, %v77
    %v79 = vsub.f32 1.0, %v78
    %v80 = vmul.f32 %v77, %v79
    %v81 = vadd.f32 %v77, %v80
    %vm82 = vweird.f32 %v77
    %v83 = vsel %vm82, %v77, %v81
    %v84 = vmul.f32 %v76, %v83
    %v85 = vsub.f32 %v69, %v84
    %v86 = vmul.f32 %v85, %v85
    %v87 = vrot.slane %v86, 4
    %v88 = vadd.f32 %v86, %v87
    %v89 = vrot.slane %v88, 2
    %v90 = vadd.f32 %v88, %v89
    %v91 = vrot.slane %v90, 1
    %v92 = vadd.f32 %v90, %v91
    %v93 = vmul.f32 %v92, %v83
    %v94 = vld [vmem:[%s2] sm:$0x1]
    %v95 = vadd.f32 %v93, 1e-05
    %v96 = vrsqrt.pop %v95
    %v97 = vmul.f32 %v96, %v95
    %v98 = vmul.f32 %v97, %v96
    %v99 = vmul.f32 0.5, %v98
    %v100 = vsub.f32 1.5, %v99
    %v101 = vmul.f32 %v96, %v100
    %vm102 = vweird.f32 %v95
    %vm103 = vweird.f32 %v96
    %vm104 = vmor %vm102, %vm103
    %v105 = vsel %vm104, %v96, %v101
    %v106 = vmul.f32 %v94, %v105
    %v108 = vperm.slane %v106, 0
    %v110 = vmul.f32 %v85, %v108
    %v111 = vld [vmem:[%s3] sm:$0x1]
    %v113 = vperm.slane %v111, 0
    %v115 = vadd.f32 %v110, %v113
    %v116 = vtanh.pop %v115
    %s117 = scalar_lea.vmem [#allocation2], 128
    %v118 = vld [vmem:[%s117] sm:$0xff]
    %v119 = vld [vmem:[%s117 + $0x8] sm:$0xff]
    %v120 = vld [vmem:[%s117 + $0x10] sm:$0xff]
    %v121 = vld [vmem:[%s117 + $0x18] sm:$0xff]
    %v122 = vld [vmem:[%s117 + $0x20] sm:$0xff]
    %v123 = vld [vmem:[%s117 + $0x28] sm:$0xff]
    %v124 = vld [vmem:[%s117 + $0x30] sm:$0xff]
    %v125 = vld [vmem:[%s117 + $0x38] sm:$0xff]
    %v126 = vld [vmem:[%s117 + $0x40] sm:$0xff]
    %v127 = vld [vmem:[%s117 + $0x48] sm:$0xff]
    %v128 = vld [vmem:[%s117 + $0x50] sm:$0xff]
    %v129 = vld [vmem:[%s117 + $0x58] sm:$0xff]
    %v130 = vld [vmem:[%s117 + $0x60] sm:$0xff]
    %v131 = vld [vmem:[%s117 + $0x68] sm:$0xff]
    %v132 = vld [vmem:[%s117 + $0x70] sm:$0xff]
    %v133 = vld [vmem:[%s117 + $0x78] sm:$0xff]
    %134 = vmatpush.msra.mxu0 %v133
    %135 = vmatpush.msra.mxu0 %v132
    %136 = vmatpush.msra.mxu0 %v131
    %137 = vmatpush.msra.mxu0 %v130
    %138 = vmatpush.msra.mxu0 %v129
    %139 = vmatpush.msra.mxu0 %v128
    %140 = vmatpush.msra.mxu0 %v127
    %141 = vmatpush.msra.mxu0 %v126
    %142 = vmatpush.msra.mxu0 %v125
    %143 = vmatpush.msra.mxu0 %v124
    %144 = vmatpush.msra.mxu0 %v123
    %145 = vmatpush.msra.mxu0 %v122
    %146 = vmatpush.msra.mxu0 %v121
    %147 = vmatpush.msra.mxu0 %v120
    %148 = vmatpush.msra.mxu0 %v119
    %149 = vmatpush.msra.mxu0 %v118
    %150 = vmatmul.f32.gmra.mxu0 %v116
    %v151 = vpop.f32.mrf.mxu0
    %v152 = vadd.f32 0.0, %v151
    %153 = vdwg.mxu0
    %v154 = vrot.slane %v152, 4
    %v155 = vadd.f32 %v152, %v154
    %v156 = vrot.slane %v155, 2
    %v157 = vadd.f32 %v155, %v156
    %v158 = vrot.slane %v157, 1
    %v159 = vadd.f32 %v157, %v158
    %v160 = vmul.f32 %v159, %v83
    %v161 = vsub.f32 %v152, %v160
    %v162 = vmul.f32 %v161, %v161
    %v163 = vrot.slane %v162, 4
    %v164 = vadd.f32 %v162, %v163
    %v165 = vrot.slane %v164, 2
    %v166 = vadd.f32 %v164, %v165
    %v167 = vrot.slane %v166, 1
    %v168 = vadd.f32 %v166, %v167
    %v169 = vmul.f32 %v168, %v83
    %s170 = scalar_lea.vmem %s2, 1
    %v171 = vld [vmem:[%s170] sm:$0x1]
    %v172 = vadd.f32 %v169, 1e-05
    %v173 = vrsqrt.pop %v172
    %v174 = vmul.f32 %v173, %v172
    %v175 = vmul.f32 %v174, %v173
    %v176 = vmul.f32 0.5, %v175
    %v177 = vsub.f32 1.5, %v176
    %v178 = vmul.f32 %v173, %v177
    %vm179 = vweird.f32 %v172
    %vm180 = vweird.f32 %v173
    %vm181 = vmor %vm179, %vm180
    %v182 = vsel %vm181, %v173, %v178
    %v183 = vmul.f32 %v171, %v182
    %v185 = vperm.slane %v183, 0
    %v187 = vmul.f32 %v161, %v185
    %s188 = scalar_lea.vmem %s3, 1
    %v189 = vld [vmem:[%s188] sm:$0x1]
    %v191 = vperm.slane %v189, 0
    %v193 = vadd.f32 %v187, %v191
    %194 = vst [vmem:[#allocation5] sm:$0xff] %v193
    // Predicated region
    $region22: #{dnn_forward.1} parent=1 // pred_check
      _
    $region23: #{dnn_forward.1} parent=1 // pred_check_branch
      %196 = sbr.rel (0) target = $region25
    $region24: #{dnn_forward.1} parent=1 // pred_region
      %198 = vsyncadd [#allocation4], 0
      %s200 = sshll.u32 [#allocation5], 4
      %s201 = int_to_ptr.vmem [resolvable:$true] %s200
      %s202 = sshll.u32 %s4, 4
      %s203 = int_to_ptr.hbm [resolvable:$true] %s202
      %205 = dma.vmem_to_hbm [thread:$0]  %s201, 128, %s203, [#allocation4]
    $region25: #{dnn_forward.1} parent=1 // pred_fallthru
      _
    // Predicated region
    $region26: #{dnn_forward.1} parent=1 // pred_check
      _
    $region27: #{dnn_forward.1} parent=1 // pred_check_branch
      %207 = sbr.rel (0) target = $region29
    $region28: #{dnn_forward.1} parent=1 // pred_region
      %209 = dma.done [#allocation4], 128
    $region29: #{dnn_forward.1} parent=1 // pred_fallthru
      _
    %210 = vsyncpa [#allocation3], 1
    %211 = vsyncpa [#allocation4], 1

</llo_original>
